<compile_context>
chip_gen: v7x
topology: tpu7x:2x2x1
jax: 0.10.0
libtpu: 0.0.40
codegen_flags: <defaults>
</compile_context>

<pallas_src>
import jax
import jax.numpy as jnp
from jax.experimental import pallas as pl
from jax.experimental.pallas import tpu as pltpu

EPS = 1e-5


def _round_up(x, m):
    return ((x + m - 1) // m) * m


# ----------------------------------------------------------------------------
# Kernel 1: everything up to (and including) the final ReLU -> h (Q, D)
# ----------------------------------------------------------------------------
def _head_kernel(e_ref, r_ref, wbe_ref, wbr_ref, cover_ref, pool_ref, poolt_ref,
                 g2e_ref, b2e_ref, wlin_ref, g3_ref, b3_ref, bn0_ref, h_ref):
    Q, D = e_ref.shape
    inv_qd = 1.0 / float(Q * D)
    inv_q = 1.0 / float(Q)
    mm_dtype = wbe_ref.dtype

    def moments2d(x, inv_n):
        # one-pass mean / biased variance over both axes, kept as (1, 1)
        s1 = jnp.sum(jnp.sum(x, axis=1, keepdims=True), axis=0, keepdims=True)
        s2 = jnp.sum(jnp.sum(x * x, axis=1, keepdims=True), axis=0, keepdims=True)
        m = s1 * inv_n
        v = jnp.maximum(s2 * inv_n - m * m, 0.0)     # clamp cancellation noise
        return m, v

    # ---- block0: BatchNorm1d(2) with batch statistics (Dropout(0) = id) ------
    e = e_ref[...]
    r = r_ref[...]
    me, ve = moments2d(e, inv_qd)
    mr, vr = moments2d(r, inv_qd)
    scale_e = bn0_ref[0] * jax.lax.rsqrt(ve + EPS)          # (1, 1)
    scale_r = bn0_ref[1] * jax.lax.rsqrt(vr + EPS)
    shift_e = bn0_ref[2] - me * scale_e
    shift_r = bn0_ref[3] - mr * scale_r

    # ---- block1: ZeroPad + Conv2d(1, C, (2, K)) as banded MXU matmuls --------
    # BN0 scale folded into the (Q, D) operands; BN0 shift arrives through the
    # edge-aware cover vectors (zero-padding means edge lanes see fewer taps).
    # conv bias is omitted: exactly cancelled by the training-mode BN below.
    conv = (jnp.dot((e * scale_e).astype(mm_dtype), wbe_ref[...],
                    preferred_element_type=jnp.float32) +
            jnp.dot((r * scale_r).astype(mm_dtype), wbr_ref[...],
                    preferred_element_type=jnp.float32))            # (Q, C*D)
    conv = conv + (shift_e * cover_ref[0:1, :] + shift_r * cover_ref[1:2, :])

    # ---- block2 head: BatchNorm1d(C) (stats over (Q, D) per channel) + ReLU --
    # Vectorized per-channel statistics via tiny pooling matmuls.
    s1 = jnp.sum(conv, axis=0, keepdims=True)                       # (1, C*D)
    s2 = jnp.sum(conv * conv, axis=0, keepdims=True)
    m_c = jnp.dot(s1, pool_ref[...], preferred_element_type=jnp.float32) * inv_qd   # (1, C)
    e2_c = jnp.dot(s2, pool_ref[...], preferred_element_type=jnp.float32) * inv_qd
    v_c = jnp.maximum(e2_c - m_c * m_c, 0.0)
    r_c = jax.lax.rsqrt(v_c + EPS)                                   # (1, C)
    m_lane = jnp.dot(m_c, poolt_ref[...], preferred_element_type=jnp.float32)       # (1, C*D)
    r_lane = jnp.dot(r_c, poolt_ref[...], preferred_element_type=jnp.float32)
    scale2 = g2e_ref[...] * r_lane
    shift2 = b2e_ref[...] - m_lane * scale2
    y = jnp.maximum(conv * scale2 + shift2, 0.0)                     # (Q, C*D)

    # ---- Flatten + Linear(C*D -> D, no bias): one wide MXU matmul ------------
    lin = jnp.dot(y.astype(wlin_ref.dtype), wlin_ref[...],
                  preferred_element_type=jnp.float32)                # (Q, D)

    # ---- block2 tail: BatchNorm1d(D) over the batch axis + ReLU --------------
    m3 = jnp.sum(lin, axis=0, keepdims=True) * inv_q                 # (1, D)
    e3 = jnp.sum(lin * lin, axis=0, keepdims=True) * inv_q
    v3 = jnp.maximum(e3 - m3 * m3, 0.0)
    scale3 = g3_ref[...] * jax.lax.rsqrt(v3 + EPS)
    shift3 = b3_ref[...] - m3 * scale3
    h_ref[...] = jnp.maximum(lin * scale3 + shift3, 0.0).astype(h_ref.dtype)


# ----------------------------------------------------------------------------
# Kernel 2: scores = h @ entity^T, streamed over lane-dense entity tiles
# ----------------------------------------------------------------------------
def _scores_kernel(h_ref, ent_ref, o_ref):
    o_ref[...] = jnp.dot(h_ref[...], ent_ref[...],
                         preferred_element_type=jnp.float32).astype(o_ref.dtype)


# ----------------------------------------------------------------------------
# Wrapper
# ----------------------------------------------------------------------------
def conv_transe_decoder(entity_ebd, relation_ebd, query, params, kernel_length,
                        *, matmul_dtype=jnp.bfloat16, scores_dtype=jnp.bfloat16,
                        e_tile=2048):
    E, D = entity_ebd.shape
    Q = query.shape[0]
    C = params["conv_w"].shape[0]
    K = kernel_length
    pad_left = K // 2 if K % 2 != 0 else K // 2 - 1

    # glue: gather the query rows only (no shifted copies are materialized).
    e = jnp.take(entity_ebd, query[:, 0], axis=0).astype(jnp.float32)   # (Q, D)
    r = jnp.take(relation_ebd, query[:, 1], axis=0).astype(jnp.float32)

    # ---- weight-only preprocessing (deployment: do once per weight update) ---
    we = params["conv_w"][:, 0, 0, :].astype(jnp.float32)               # (C, K)
    wr = params["conv_w"][:, 0, 1, :].astype(jnp.float32)
    d_idx = jnp.arange(D)[:, None]
    l_idx = jnp.arange(D)[None, :]
    tap = d_idx - l_idx + pad_left                                       # (D, D)
    valid = (tap >= 0) & (tap < K)
    tap_c = jnp.clip(tap, 0, K - 1)

    def band(w):   # (C, K) -> (D, C*D) conv-as-matmul banded matrix
        b = jnp.where(valid[None, :, :], w[:, tap_c], 0.0)               # (C, D, D)
        return jnp.transpose(b, (1, 0, 2)).reshape(D, C * D)

    wband_e = band(we).astype(matmul_dtype)
    wband_r = band(wr).astype(matmul_dtype)

    pos = jnp.arange(D)[:, None] + jnp.arange(K)[None, :] - pad_left     # (D, K)
    in_range = ((pos >= 0) & (pos < D)).astype(jnp.float32)

    def cover(w):   # edge-aware weight of the BN0 shift after zero-padding
        return (w[:, None, :] * in_range[None, :, :]).sum(-1).reshape(1, C * D)

    cover_er = jnp.concatenate([cover(we), cover(wr)], axis=0)           # (2, C*D)

    pool = jnp.repeat(jnp.eye(C, dtype=jnp.float32), D, axis=0)          # (C*D, C)
    poolt = pool.T                                                        # (C, C*D)
    g2e = jnp.repeat(params["g2"].astype(jnp.float32), D)[None, :]       # (1, C*D)
    b2e = jnp.repeat(params["b2"].astype(jnp.float32), D)[None, :]
    wlin = params["lin_w"].T.astype(matmul_dtype)                        # (C*D, D)
    g3 = params["g3"][None, :].astype(jnp.float32)
    b3 = params["b3"][None, :].astype(jnp.float32)
    bn0 = jnp.concatenate([params["g0"], params["b0"]]).astype(jnp.float32)  # (4,) [ge, gr, be, br]

    vmem = pl.BlockSpec(memory_space=pltpu.MemorySpace.VMEM)
    smem = pl.BlockSpec(memory_space=pltpu.MemorySpace.SMEM)

    # TODO(synk): the head is a single gridless invocation (training-mode BN needs
    # full-batch statistics); for very large Q split it into a stats pass + an
    # apply pass tiled over Q (pipelines, fits v7x's 64 MiB VMEM, uses both TCs),
    # and pad D up to a multiple of 128 for lane-dense stores.
    h = pl.pallas_call(
        _head_kernel,
        out_shape=jax.ShapeDtypeStruct((Q, D), matmul_dtype),
        in_specs=[vmem] * 12 + [smem],
        out_specs=vmem,
        compiler_params=pltpu.CompilerParams(vmem_limit_bytes=48 * 1024 * 1024),
    )(e, r, wband_e, wband_r, cover_er, pool, poolt, g2e, b2e, wlin, g3, b3, bn0)

    # ---- kernel 2: scores, tiled over 128-multiple entity columns ------------
    out_b = jnp.dtype(scores_dtype).itemsize
    mm_b = jnp.dtype(matmul_dtype).itemsize
    e_tile = max(128, _round_up(min(e_tile, E), 128))
    # shrink the tile until the double-buffered working set fits v7x's 64 MiB
    while e_tile > 128 and (2 * (Q * e_tile * out_b + e_tile * D * mm_b)
                            + Q * D * mm_b) > 56 * 1024 * 1024:
        e_tile //= 2
    e_pad = _round_up(E, e_tile)

    # One-time transpose/cast/pad of the entity table: tiles then contract with a
    # plain ((1,),(0,)) matmul (no per-step transpose) and stores are lane-dense.
    # In deployment store the table as (D, e_pad) in matmul_dtype so this and the
    # final slice are no-ops.
    ent_t = entity_ebd.T.astype(matmul_dtype)                            # (D, E)
    if e_pad != E:
        ent_t = jnp.pad(ent_t, ((0, 0), (0, e_pad - E)))

    budget = 2 * (Q * e_tile * out_b + e_tile * D * mm_b) + Q * D * mm_b + (2 << 20)
    scores = pl.pallas_call(
        _scores_kernel,
        out_shape=jax.ShapeDtypeStruct((Q, e_pad), scores_dtype),
        grid=(e_pad // e_tile,),
        in_specs=[pl.BlockSpec((Q, D), lambda i: (0, 0)),        # h stays resident
                  pl.BlockSpec((D, e_tile), lambda i: (0, i))],  # stream entity tiles
        out_specs=pl.BlockSpec((Q, e_tile), lambda i: (0, i)),
        compiler_params=pltpu.CompilerParams(
            dimension_semantics=("parallel",),                   # megacore on v7x
            vmem_limit_bytes=int(max(budget, 8 << 20))),
    )(h, ent_t)

    if e_pad != E:
        scores = scores[:, :E]     # disappears when the table is stored pre-padded
    return scores


# ----------------------------------------------------------------------------
# Pure-JAX reference (training-mode BN, dropout = 0), mirrors the PyTorch module
# ----------------------------------------------------------------------------
def reference(entity_ebd, relation_ebd, query, params, kernel_length):
    K = kernel_length
    e = entity_ebd[query[:, 0]]
    r = relation_ebd[query[:, 1]]
    x = jnp.stack([e, r], axis=1)                                        # (Q, 2, D)
    m = x.mean(axis=(0, 2), keepdims=True)
    v = ((x - m) ** 2).mean(axis=(0, 2), keepdims=True)
    x = (x - m) / jnp.sqrt(v + EPS) * params["g0"][None, :, None] + params["b0"][None, :, None]
    pad_left = K // 2 if K % 2 != 0 else K // 2 - 1
    pad_right = K - 1 - pad_left
    xp = jnp.pad(x[:, None, :, :], ((0, 0), (0, 0), (0, 0), (pad_left, pad_right)))
    conv = jax.lax.conv_general_dilated(xp, params["conv_w"], (1, 1), "VALID",
                                        dimension_numbers=("NCHW", "OIHW", "NCHW"))
    conv = conv[:, :, 0, :] + params["conv_b"][None, :, None]            # (Q, C, D)
    m2 = conv.mean(axis=(0, 2), keepdims=True)
    v2 = ((conv - m2) ** 2).mean(axis=(0, 2), keepdims=True)
    y = jnp.maximum((conv - m2) / jnp.sqrt(v2 + EPS) * params["g2"][None, :, None]
                    + params["b2"][None, :, None], 0.0)
    flat = y.reshape(y.shape[0], -1)
    lin = flat @ params["lin_w"].T                                       # (Q, D)
    m3 = lin.mean(axis=0, keepdims=True)
    v3 = ((lin - m3) ** 2).mean(axis=0, keepdims=True)
    h = jnp.maximum((lin - m3) / jnp.sqrt(v3 + EPS) * params["g3"] + params["b3"], 0.0)
    return h @ entity_ebd.T


if __name__ == "__main__":
    D, C, K = 32, 8, 3          # input_dim, num_channel, kernel_length
    E, R, Q = 16, 4, 8          # num_entity, num_relation, num_query

    key = jax.random.PRNGKey(0)
    ks = jax.random.split(key, 12)
    entity_ebd = jax.random.normal(ks[0], (E, D), jnp.float32)
    relation_ebd = jax.random.normal(ks[1], (R, D), jnp.float32)
    query = jnp.stack([jax.random.randint(ks[2], (Q,), 0, E),
                       jax.random.randint(ks[3], (Q,), 0, R)], axis=1).astype(jnp.int32)

    params = dict(
        conv_w=0.2 * jax.random.normal(ks[4], (C, 1, 2, K), jnp.float32),
        conv_b=0.1 * jax.random.normal(ks[5], (C,), jnp.float32),
        lin_w=0.05 * jax.random.normal(ks[6], (D, C * D), jnp.float32),
        g0=1.0 + 0.1 * jax.random.normal(ks[7], (2,), jnp.float32),
        b0=0.1 * jax.random.normal(ks[8], (2,), jnp.float32),
        g2=1.0 + 0.1 * jax.random.normal(ks[9], (C,), jnp.float32),
        b2=0.1 * jax.random.normal(ks[10], (C,), jnp.float32),
        g3=1.0 + 0.1 * jax.random.normal(ks[11], (D,), jnp.float32),
        b3=jnp.zeros((D,), jnp.float32),
    )

    ref = reference(entity_ebd, relation_ebd, query, params, K)

    # f32 path: tight numerical check of the fused pipeline.
    out_f32 = conv_transe_decoder(entity_ebd, relation_ebd, query, params, K,
                                  matmul_dtype=jnp.float32,
                                  scores_dtype=jnp.float32)
    out_f32 = jax.block_until_ready(out_f32)
    assert out_f32.shape == (Q, E)
    assert jnp.allclose(out_f32, ref, rtol=1e-3, atol=1e-3), \
        float(jnp.max(jnp.abs(out_f32 - ref)))

    # bf16 perf-default path: bf16 MXU operands + bf16 score output, f32 accum.
    out_bf16 = conv_transe_decoder(entity_ebd, relation_ebd, query, params, K)
    out_bf16 = jax.block_until_ready(out_bf16)
    assert out_bf16.shape == (Q, E)
    assert jnp.allclose(out_bf16.astype(jnp.float32), ref, rtol=1e-1, atol=1e-1), \
        float(jnp.max(jnp.abs(out_bf16.astype(jnp.float32) - ref)))

    print("KERNEL_OK")
</pallas_src>

<mosaic_0001>
module attributes {stable_mosaic.version = 11 : i64} {
  func.func @_head_kernel(%arg0: memref<8x32xf32, #tpu.memory_space<vmem>>, %arg1: memref<8x32xf32, #tpu.memory_space<vmem>>, %arg2: memref<32x256xf32, #tpu.memory_space<vmem>>, %arg3: memref<32x256xf32, #tpu.memory_space<vmem>>, %arg4: memref<2x256xf32, #tpu.memory_space<vmem>>, %arg5: memref<256x8xf32, #tpu.memory_space<vmem>>, %arg6: memref<8x256xf32, #tpu.memory_space<vmem>>, %arg7: memref<1x256xf32, #tpu.memory_space<vmem>>, %arg8: memref<1x256xf32, #tpu.memory_space<vmem>>, %arg9: memref<256x32xf32, #tpu.memory_space<vmem>>, %arg10: memref<1x32xf32, #tpu.memory_space<vmem>>, %arg11: memref<1x32xf32, #tpu.memory_space<vmem>>, %arg12: memref<4xf32, #tpu.memory_space<smem>>, %arg13: memref<8x32xf32, #tpu.memory_space<vmem>>) attributes {dimension_semantics = [], scalar_prefetch = 0 : i64, scratch_operands = 0 : i64, tpu.core_type = #tpu.core_type<tc>} {
    %c0 = arith.constant 0 : index
    %c0_0 = arith.constant 0 : index
    %0 = vector.load %arg0[%c0, %c0_0] : memref<8x32xf32, #tpu.memory_space<vmem>>, vector<8x32xf32>
    %c0_1 = arith.constant 0 : index
    %c0_2 = arith.constant 0 : index
    %1 = vector.load %arg1[%c0_1, %c0_2] : memref<8x32xf32, #tpu.memory_space<vmem>>, vector<8x32xf32>
    %cst = arith.constant dense<0.000000e+00> : vector<8xf32>
    %2 = vector.multi_reduction <add>, %0, %cst [1] : vector<8x32xf32> to vector<8xf32>
    %3 = vector.shape_cast %2 : vector<8xf32> to vector<8x1xf32>
    %cst_3 = arith.constant dense<0.000000e+00> : vector<1xf32>
    %4 = vector.multi_reduction <add>, %3, %cst_3 [0] : vector<8x1xf32> to vector<1xf32>
    %5 = vector.shape_cast %4 : vector<1xf32> to vector<1x1xf32>
    %6 = arith.mulf %0, %0 : vector<8x32xf32>
    %cst_4 = arith.constant dense<0.000000e+00> : vector<8xf32>
    %7 = vector.multi_reduction <add>, %6, %cst_4 [1] : vector<8x32xf32> to vector<8xf32>
    %8 = vector.shape_cast %7 : vector<8xf32> to vector<8x1xf32>
    %cst_5 = arith.constant dense<0.000000e+00> : vector<1xf32>
    %9 = vector.multi_reduction <add>, %8, %cst_5 [0] : vector<8x1xf32> to vector<1xf32>
    %10 = vector.shape_cast %9 : vector<1xf32> to vector<1x1xf32>
    %cst_6 = arith.constant 3.906250e-03 : f32
    %11 = vector.broadcast %cst_6 : f32 to vector<1x1xf32>
    %12 = arith.mulf %5, %11 : vector<1x1xf32>
    %cst_7 = arith.constant 3.906250e-03 : f32
    %13 = vector.broadcast %cst_7 : f32 to vector<1x1xf32>
    %14 = arith.mulf %10, %13 : vector<1x1xf32>
    %15 = arith.mulf %12, %12 : vector<1x1xf32>
    %16 = arith.subf %14, %15 : vector<1x1xf32>
    %cst_8 = arith.constant 0.000000e+00 : f32
    %17 = vector.broadcast %cst_8 : f32 to vector<1x1xf32>
    %18 = arith.maximumf %16, %17 : vector<1x1xf32>
    %cst_9 = arith.constant dense<0.000000e+00> : vector<8xf32>
    %19 = vector.multi_reduction <add>, %1, %cst_9 [1] : vector<8x32xf32> to vector<8xf32>
    %20 = vector.shape_cast %19 : vector<8xf32> to vector<8x1xf32>
    %cst_10 = arith.constant dense<0.000000e+00> : vector<1xf32>
    %21 = vector.multi_reduction <add>, %20, %cst_10 [0] : vector<8x1xf32> to vector<1xf32>
    %22 = vector.shape_cast %21 : vector<1xf32> to vector<1x1xf32>
    %23 = arith.mulf %1, %1 : vector<8x32xf32>
    %cst_11 = arith.constant dense<0.000000e+00> : vector<8xf32>
    %24 = vector.multi_reduction <add>, %23, %cst_11 [1] : vector<8x32xf32> to vector<8xf32>
    %25 = vector.shape_cast %24 : vector<8xf32> to vector<8x1xf32>
    %cst_12 = arith.constant dense<0.000000e+00> : vector<1xf32>
    %26 = vector.multi_reduction <add>, %25, %cst_12 [0] : vector<8x1xf32> to vector<1xf32>
    %27 = vector.shape_cast %26 : vector<1xf32> to vector<1x1xf32>
    %cst_13 = arith.constant 3.906250e-03 : f32
    %28 = vector.broadcast %cst_13 : f32 to vector<1x1xf32>
    %29 = arith.mulf %22, %28 : vector<1x1xf32>
    %cst_14 = arith.constant 3.906250e-03 : f32
    %30 = vector.broadcast %cst_14 : f32 to vector<1x1xf32>
    %31 = arith.mulf %27, %30 : vector<1x1xf32>
    %32 = arith.mulf %29, %29 : vector<1x1xf32>
    %33 = arith.subf %31, %32 : vector<1x1xf32>
    %cst_15 = arith.constant 0.000000e+00 : f32
    %34 = vector.broadcast %cst_15 : f32 to vector<1x1xf32>
    %35 = arith.maximumf %33, %34 : vector<1x1xf32>
    %c0_16 = arith.constant 0 : index
    %36 = memref.load %arg12[%c0_16] : memref<4xf32, #tpu.memory_space<smem>>
    %cst_17 = arith.constant 9.99999974E-6 : f32
    %37 = vector.broadcast %cst_17 : f32 to vector<1x1xf32>
    %38 = arith.addf %18, %37 : vector<1x1xf32>
    %39 = math.rsqrt %38 : vector<1x1xf32>
    %40 = vector.broadcast %36 : f32 to vector<1x1xf32>
    %41 = arith.mulf %40, %39 : vector<1x1xf32>
    %c1 = arith.constant 1 : index
    %42 = memref.load %arg12[%c1] : memref<4xf32, #tpu.memory_space<smem>>
    %cst_18 = arith.constant 9.99999974E-6 : f32
    %43 = vector.broadcast %cst_18 : f32 to vector<1x1xf32>
    %44 = arith.addf %35, %43 : vector<1x1xf32>
    %45 = math.rsqrt %44 : vector<1x1xf32>
    %46 = vector.broadcast %42 : f32 to vector<1x1xf32>
    %47 = arith.mulf %46, %45 : vector<1x1xf32>
    %c2 = arith.constant 2 : index
    %48 = memref.load %arg12[%c2] : memref<4xf32, #tpu.memory_space<smem>>
    %49 = arith.mulf %12, %41 : vector<1x1xf32>
    %50 = vector.broadcast %48 : f32 to vector<1x1xf32>
    %51 = arith.subf %50, %49 : vector<1x1xf32>
    %c3 = arith.constant 3 : index
    %52 = memref.load %arg12[%c3] : memref<4xf32, #tpu.memory_space<smem>>
    %53 = arith.mulf %29, %47 : vector<1x1xf32>
    %54 = vector.broadcast %52 : f32 to vector<1x1xf32>
    %55 = arith.subf %54, %53 : vector<1x1xf32>
    %56 = vector.broadcast %41 : vector<1x1xf32> to vector<8x32xf32>
    %57 = arith.mulf %0, %56 : vector<8x32xf32>
    %c0_19 = arith.constant 0 : index
    %c0_20 = arith.constant 0 : index
    %58 = vector.load %arg2[%c0_19, %c0_20] : memref<32x256xf32, #tpu.memory_space<vmem>>, vector<32x256xf32>
    %cst_21 = arith.constant dense<0.000000e+00> : vector<8x256xf32>
    %59 = tpu.matmul %57, %58, %cst_21 {dimension_numbers = #tpu.dot_dimension_numbers<[1], [0], [0], [1], [0, 0, 1, 1], [], []>} : vector<8x32xf32>, vector<32x256xf32>, vector<8x256xf32> -> vector<8x256xf32>
    %60 = vector.broadcast %47 : vector<1x1xf32> to vector<8x32xf32>
    %61 = arith.mulf %1, %60 : vector<8x32xf32>
    %c0_22 = arith.constant 0 : index
    %c0_23 = arith.constant 0 : index
    %62 = vector.load %arg3[%c0_22, %c0_23] : memref<32x256xf32, #tpu.memory_space<vmem>>, vector<32x256xf32>
    %cst_24 = arith.constant dense<0.000000e+00> : vector<8x256xf32>
    %63 = tpu.matmul %61, %62, %cst_24 {dimension_numbers = #tpu.dot_dimension_numbers<[1], [0], [0], [1], [0, 0, 1, 1], [], []>} : vector<8x32xf32>, vector<32x256xf32>, vector<8x256xf32> -> vector<8x256xf32>
    %64 = arith.addf %59, %63 : vector<8x256xf32>
    %c0_25 = arith.constant 0 : index
    %c0_26 = arith.constant 0 : index
    %65 = vector.load %arg4[%c0_25, %c0_26] : memref<2x256xf32, #tpu.memory_space<vmem>>, vector<1x256xf32>
    %66 = vector.broadcast %51 : vector<1x1xf32> to vector<1x256xf32>
    %67 = arith.mulf %66, %65 : vector<1x256xf32>
    %c1_27 = arith.constant 1 : index
    %c0_28 = arith.constant 0 : index
    %68 = vector.load %arg4[%c1_27, %c0_28] : memref<2x256xf32, #tpu.memory_space<vmem>>, vector<1x256xf32>
    %69 = vector.broadcast %55 : vector<1x1xf32> to vector<1x256xf32>
    %70 = arith.mulf %69, %68 : vector<1x256xf32>
    %71 = arith.addf %67, %70 : vector<1x256xf32>
    %72 = vector.broadcast %71 : vector<1x256xf32> to vector<8x256xf32>
    %73 = arith.addf %64, %72 : vector<8x256xf32>
    %cst_29 = arith.constant dense<0.000000e+00> : vector<256xf32>
    %74 = vector.multi_reduction <add>, %73, %cst_29 [0] : vector<8x256xf32> to vector<256xf32>
    %75 = vector.shape_cast %74 : vector<256xf32> to vector<1x256xf32>
    %76 = arith.mulf %73, %73 : vector<8x256xf32>
    %cst_30 = arith.constant dense<0.000000e+00> : vector<256xf32>
    %77 = vector.multi_reduction <add>, %76, %cst_30 [0] : vector<8x256xf32> to vector<256xf32>
    %78 = vector.shape_cast %77 : vector<256xf32> to vector<1x256xf32>
    %c0_31 = arith.constant 0 : index
    %c0_32 = arith.constant 0 : index
    %79 = vector.load %arg5[%c0_31, %c0_32] : memref<256x8xf32, #tpu.memory_space<vmem>>, vector<256x8xf32>
    %cst_33 = arith.constant dense<0.000000e+00> : vector<1x8xf32>
    %80 = tpu.matmul %75, %79, %cst_33 {dimension_numbers = #tpu.dot_dimension_numbers<[1], [0], [0], [1], [0, 0, 1, 1], [], []>} : vector<1x256xf32>, vector<256x8xf32>, vector<1x8xf32> -> vector<1x8xf32>
    %cst_34 = arith.constant 3.906250e-03 : f32
    %81 = vector.broadcast %cst_34 : f32 to vector<1x8xf32>
    %82 = arith.mulf %80, %81 : vector<1x8xf32>
    %c0_35 = arith.constant 0 : index
    %c0_36 = arith.constant 0 : index
    %83 = vector.load %arg5[%c0_35, %c0_36] : memref<256x8xf32, #tpu.memory_space<vmem>>, vector<256x8xf32>
    %cst_37 = arith.constant dense<0.000000e+00> : vector<1x8xf32>
    %84 = tpu.matmul %78, %83, %cst_37 {dimension_numbers = #tpu.dot_dimension_numbers<[1], [0], [0], [1], [0, 0, 1, 1], [], []>} : vector<1x256xf32>, vector<256x8xf32>, vector<1x8xf32> -> vector<1x8xf32>
    %cst_38 = arith.constant 3.906250e-03 : f32
    %85 = vector.broadcast %cst_38 : f32 to vector<1x8xf32>
    %86 = arith.mulf %84, %85 : vector<1x8xf32>
    %87 = arith.mulf %82, %82 : vector<1x8xf32>
    %88 = arith.subf %86, %87 : vector<1x8xf32>
    %cst_39 = arith.constant 0.000000e+00 : f32
    %89 = vector.broadcast %cst_39 : f32 to vector<1x8xf32>
    %90 = arith.maximumf %88, %89 : vector<1x8xf32>
    %cst_40 = arith.constant 9.99999974E-6 : f32
    %91 = vector.broadcast %cst_40 : f32 to vector<1x8xf32>
    %92 = arith.addf %90, %91 : vector<1x8xf32>
    %93 = math.rsqrt %92 : vector<1x8xf32>
    %c0_41 = arith.constant 0 : index
    %c0_42 = arith.constant 0 : index
    %94 = vector.load %arg6[%c0_41, %c0_42] : memref<8x256xf32, #tpu.memory_space<vmem>>, vector<8x256xf32>
    %cst_43 = arith.constant dense<0.000000e+00> : vector<1x256xf32>
    %95 = tpu.matmul %82, %94, %cst_43 {dimension_numbers = #tpu.dot_dimension_numbers<[1], [0], [0], [1], [0, 0, 1, 1], [], []>} : vector<1x8xf32>, vector<8x256xf32>, vector<1x256xf32> -> vector<1x256xf32>
    %c0_44 = arith.constant 0 : index
    %c0_45 = arith.constant 0 : index
    %96 = vector.load %arg6[%c0_44, %c0_45] : memref<8x256xf32, #tpu.memory_space<vmem>>, vector<8x256xf32>
    %cst_46 = arith.constant dense<0.000000e+00> : vector<1x256xf32>
    %97 = tpu.matmul %93, %96, %cst_46 {dimension_numbers = #tpu.dot_dimension_numbers<[1], [0], [0], [1], [0, 0, 1, 1], [], []>} : vector<1x8xf32>, vector<8x256xf32>, vector<1x256xf32> -> vector<1x256xf32>
    %c0_47 = arith.constant 0 : index
    %c0_48 = arith.constant 0 : index
    %98 = vector.load %arg7[%c0_47, %c0_48] : memref<1x256xf32, #tpu.memory_space<vmem>>, vector<1x256xf32>
    %99 = arith.mulf %98, %97 : vector<1x256xf32>
    %c0_49 = arith.constant 0 : index
    %c0_50 = arith.constant 0 : index
    %100 = vector.load %arg8[%c0_49, %c0_50] : memref<1x256xf32, #tpu.memory_space<vmem>>, vector<1x256xf32>
    %101 = arith.mulf %95, %99 : vector<1x256xf32>
    %102 = arith.subf %100, %101 : vector<1x256xf32>
    %103 = vector.broadcast %99 : vector<1x256xf32> to vector<8x256xf32>
    %104 = arith.mulf %73, %103 : vector<8x256xf32>
    %105 = vector.broadcast %102 : vector<1x256xf32> to vector<8x256xf32>
    %106 = arith.addf %104, %105 : vector<8x256xf32>
    %cst_51 = arith.constant 0.000000e+00 : f32
    %107 = vector.broadcast %cst_51 : f32 to vector<8x256xf32>
    %108 = arith.maximumf %106, %107 : vector<8x256xf32>
    %c0_52 = arith.constant 0 : index
    %c0_53 = arith.constant 0 : index
    %109 = vector.load %arg9[%c0_52, %c0_53] : memref<256x32xf32, #tpu.memory_space<vmem>>, vector<256x32xf32>
    %cst_54 = arith.constant dense<0.000000e+00> : vector<8x32xf32>
    %110 = tpu.matmul %108, %109, %cst_54 {dimension_numbers = #tpu.dot_dimension_numbers<[1], [0], [0], [1], [0, 0, 1, 1], [], []>} : vector<8x256xf32>, vector<256x32xf32>, vector<8x32xf32> -> vector<8x32xf32>
    %cst_55 = arith.constant dense<0.000000e+00> : vector<32xf32>
    %111 = vector.multi_reduction <add>, %110, %cst_55 [0] : vector<8x32xf32> to vector<32xf32>
    %112 = vector.shape_cast %111 : vector<32xf32> to vector<1x32xf32>
    %cst_56 = arith.constant 1.250000e-01 : f32
    %113 = vector.broadcast %cst_56 : f32 to vector<1x32xf32>
    %114 = arith.mulf %112, %113 : vector<1x32xf32>
    %115 = arith.mulf %110, %110 : vector<8x32xf32>
    %cst_57 = arith.constant dense<0.000000e+00> : vector<32xf32>
    %116 = vector.multi_reduction <add>, %115, %cst_57 [0] : vector<8x32xf32> to vector<32xf32>
    %117 = vector.shape_cast %116 : vector<32xf32> to vector<1x32xf32>
    %cst_58 = arith.constant 1.250000e-01 : f32
    %118 = vector.broadcast %cst_58 : f32 to vector<1x32xf32>
    %119 = arith.mulf %117, %118 : vector<1x32xf32>
    %120 = arith.mulf %114, %114 : vector<1x32xf32>
    %121 = arith.subf %119, %120 : vector<1x32xf32>
    %cst_59 = arith.constant 0.000000e+00 : f32
    %122 = vector.broadcast %cst_59 : f32 to vector<1x32xf32>
    %123 = arith.maximumf %121, %122 : vector<1x32xf32>
    %c0_60 = arith.constant 0 : index
    %c0_61 = arith.constant 0 : index
    %124 = vector.load %arg10[%c0_60, %c0_61] : memref<1x32xf32, #tpu.memory_space<vmem>>, vector<1x32xf32>
    %cst_62 = arith.constant 9.99999974E-6 : f32
    %125 = vector.broadcast %cst_62 : f32 to vector<1x32xf32>
    %126 = arith.addf %123, %125 : vector<1x32xf32>
    %127 = math.rsqrt %126 : vector<1x32xf32>
    %128 = arith.mulf %124, %127 : vector<1x32xf32>
    %c0_63 = arith.constant 0 : index
    %c0_64 = arith.constant 0 : index
    %129 = vector.load %arg11[%c0_63, %c0_64] : memref<1x32xf32, #tpu.memory_space<vmem>>, vector<1x32xf32>
    %130 = arith.mulf %114, %128 : vector<1x32xf32>
    %131 = arith.subf %129, %130 : vector<1x32xf32>
    %132 = vector.broadcast %128 : vector<1x32xf32> to vector<8x32xf32>
    %133 = arith.mulf %110, %132 : vector<8x32xf32>
    %134 = vector.broadcast %131 : vector<1x32xf32> to vector<8x32xf32>
    %135 = arith.addf %133, %134 : vector<8x32xf32>
    %cst_65 = arith.constant 0.000000e+00 : f32
    %136 = vector.broadcast %cst_65 : f32 to vector<8x32xf32>
    %137 = arith.maximumf %135, %136 : vector<8x32xf32>
    %c0_66 = arith.constant 0 : index
    %c0_67 = arith.constant 0 : index
    %138 = vector.load %arg13[%c0_66, %c0_67] : memref<8x32xf32, #tpu.memory_space<vmem>>, vector<8x32xf32>
    tpu.vector_store %arg13[%c0_66, %c0_67], %137 {strides = array<i32>} : memref<8x32xf32, #tpu.memory_space<vmem>>, vector<8x32xf32>,
    return
  }
}

</mosaic_0001>

<llo_original>
// kernel: tpu_custom_call.1
$region0: #{tpu_custom_call.1}
  #allocation0 [shape = 'u32[]', space=smem, size = 0x4, offset = 0x4, fixed_abs, tag = 'smem constant byte address 0x4 - core index']
  #allocation1 [shape = 'u32[144,128]{1,0:T(1,128)}', space=vmem, size = 0x12000, scoped, tag = 'internal scratch']
  %s0 = inlined_call_operand.vmem [shape: f32[8,32], index: 0, kind: input, shape index: {}]
  %s1 = inlined_call_operand.vmem [shape: f32[8,32], index: 1, kind: input, shape index: {}]
  %s2 = inlined_call_operand.vmem [shape: f32[32,256], index: 2, kind: input, shape index: {}]
  %s3 = inlined_call_operand.vmem [shape: f32[32,256], index: 3, kind: input, shape index: {}]
  %s4 = inlined_call_operand.vmem [shape: f32[2,256], index: 4, kind: input, shape index: {}]
  %s5 = inlined_call_operand.vmem [shape: f32[256,8], index: 5, kind: input, shape index: {}]
  %s6 = inlined_call_operand.vmem [shape: f32[8,256], index: 6, kind: input, shape index: {}]
  %s7 = inlined_call_operand.vmem [shape: f32[1,256], index: 7, kind: input, shape index: {}]
  %s8 = inlined_call_operand.vmem [shape: f32[1,256], index: 8, kind: input, shape index: {}]
  %s9 = inlined_call_operand.vmem [shape: f32[256,32], index: 9, kind: input, shape index: {}]
  %s10 = inlined_call_operand.vmem [shape: f32[1,32], index: 10, kind: input, shape index: {}]
  %s11 = inlined_call_operand.vmem [shape: f32[1,32], index: 11, kind: input, shape index: {}]
  %s12 = inlined_call_operand.vmem [shape: f32[4], index: 12, kind: input, shape index: {}]
  %s13 = inlined_call_operand.hbm [shape: f32[8,32], index: 13, kind: output, shape index: {}]
  %s14 = sld [smem:[#allocation0]]
  $region66: #{tpu_custom_call.1} parent=0
    _
  %s16 = ssub.s32 1, %s14
  %s17 = scalar_select 0, %s16, %s14
  $region1: #{tpu_custom_call.1} parent=0
    #allocation2 [shape = 'u8[512]{0}', space=smem, size = 0x200, scoped, tag = 'input window, operand 12, single buffered']
    #allocation3 [shape = 's32[1]{0}', space=sflag, size = 0x4, scoped, tag = 'scoped memory for tpu_custom_call.1']
    #allocation4 [shape = 's32[1]{0}', space=sflag, size = 0x4, scoped, tag = 'scoped memory for tpu_custom_call.1']
    #allocation5 [shape = 'u8[4096]{0}', space=vmem, size = 0x1000, scoped, tag = 'output window, operand 0, single buffered']
    %18 = vsyncpa [#allocation4], 0
    %19 = vsyncpa [#allocation3], 0
    // Predicated region
    $region2: #{tpu_custom_call.1} parent=1 // pred_check
      _
    $region3: #{tpu_custom_call.1} parent=1 // pred_check_branch
      %21 = sbr.rel (0) target = $region5
    $region4: #{tpu_custom_call.1} parent=1 // pred_region
      _
    $region5: #{tpu_custom_call.1} parent=1 // pred_fallthru
      _
    // Predicated region
    $region6: #{tpu_custom_call.1} parent=1 // pred_check
      _
    $region7: #{tpu_custom_call.1} parent=1 // pred_check_branch
      %23 = sbr.rel (0) target = $region9
    $region8: #{tpu_custom_call.1} parent=1 // pred_region
      _
    $region9: #{tpu_custom_call.1} parent=1 // pred_fallthru
      _
    // Predicated region
    $region10: #{tpu_custom_call.1} parent=1 // pred_check
      _
    $region11: #{tpu_custom_call.1} parent=1 // pred_check_branch
      %25 = sbr.rel (0) target = $region13
    $region12: #{tpu_custom_call.1} parent=1 // pred_region
      _
    $region13: #{tpu_custom_call.1} parent=1 // pred_fallthru
      _
    // Predicated region
    $region14: #{tpu_custom_call.1} parent=1 // pred_check
      _
    $region15: #{tpu_custom_call.1} parent=1 // pred_check_branch
      %27 = sbr.rel (0) target = $region17
    $region16: #{tpu_custom_call.1} parent=1 // pred_region
      _
    $region17: #{tpu_custom_call.1} parent=1 // pred_fallthru
      _
    // Predicated region
    $region18: #{tpu_custom_call.1} parent=1 // pred_check
      _
    $region19: #{tpu_custom_call.1} parent=1 // pred_check_branch
      %29 = sbr.rel (0) target = $region21
    $region20: #{tpu_custom_call.1} parent=1 // pred_region
      _
    $region21: #{tpu_custom_call.1} parent=1 // pred_fallthru
      _
    // Predicated region
    $region22: #{tpu_custom_call.1} parent=1 // pred_check
      _
    $region23: #{tpu_custom_call.1} parent=1 // pred_check_branch
      %31 = sbr.rel (0) target = $region25
    $region24: #{tpu_custom_call.1} parent=1 // pred_region
      _
    $region25: #{tpu_custom_call.1} parent=1 // pred_fallthru
      _
    // Predicated region
    $region26: #{tpu_custom_call.1} parent=1 // pred_check
      _
    $region27: #{tpu_custom_call.1} parent=1 // pred_check_branch
      %33 = sbr.rel (0) target = $region29
    $region28: #{tpu_custom_call.1} parent=1 // pred_region
      _
    $region29: #{tpu_custom_call.1} parent=1 // pred_fallthru
      _
    // Predicated region
    $region30: #{tpu_custom_call.1} parent=1 // pred_check
      _
    $region31: #{tpu_custom_call.1} parent=1 // pred_check_branch
      %35 = sbr.rel (0) target = $region33
    $region32: #{tpu_custom_call.1} parent=1 // pred_region
      _
    $region33: #{tpu_custom_call.1} parent=1 // pred_fallthru
      _
    // Predicated region
    $region34: #{tpu_custom_call.1} parent=1 // pred_check
      _
    $region35: #{tpu_custom_call.1} parent=1 // pred_check_branch
      %37 = sbr.rel (0) target = $region37
    $region36: #{tpu_custom_call.1} parent=1 // pred_region
      _
    $region37: #{tpu_custom_call.1} parent=1 // pred_fallthru
      _
    // Predicated region
    $region38: #{tpu_custom_call.1} parent=1 // pred_check
      _
    $region39: #{tpu_custom_call.1} parent=1 // pred_check_branch
      %39 = sbr.rel (0) target = $region41
    $region40: #{tpu_custom_call.1} parent=1 // pred_region
      _
    $region41: #{tpu_custom_call.1} parent=1 // pred_fallthru
      _
    // Predicated region
    $region42: #{tpu_custom_call.1} parent=1 // pred_check
      _
    $region43: #{tpu_custom_call.1} parent=1 // pred_check_branch
      %41 = sbr.rel (0) target = $region45
    $region44: #{tpu_custom_call.1} parent=1 // pred_region
      _
    $region45: #{tpu_custom_call.1} parent=1 // pred_fallthru
      _
    // Predicated region
    $region46: #{tpu_custom_call.1} parent=1 // pred_check
      _
    $region47: #{tpu_custom_call.1} parent=1 // pred_check_branch
      %43 = sbr.rel (0) target = $region49
    $region48: #{tpu_custom_call.1} parent=1 // pred_region
      _
    $region49: #{tpu_custom_call.1} parent=1 // pred_fallthru
      _
    // Predicated region
    $region50: #{tpu_custom_call.1} parent=1 // pred_check
      _
    $region51: #{tpu_custom_call.1} parent=1 // pred_check_branch
      %45 = sbr.rel (0) target = $region53
    $region52: #{tpu_custom_call.1} parent=1 // pred_region
      %s47 = ssub.s32 16, 16
      %48 = vsyncadd [#allocation4], %s47
      %s50 = sshll.u32 %s12, 4
      %s51 = int_to_ptr.vmem [resolvable:$true] %s50
      %53 = dma.vmem_to_smem %s51, 16, [#allocation2], [#allocation4]
    $region53: #{tpu_custom_call.1} parent=1 // pred_fallthru
      _
    // Predicated region
    $region54: #{tpu_custom_call.1} parent=1 // pred_check
      _
    $region55: #{tpu_custom_call.1} parent=1 // pred_check_branch
      %55 = sbr.rel (0) target = $region57
    $region56: #{tpu_custom_call.1} parent=1 // pred_region
      %56 = dma.done [#allocation4], 16
    $region57: #{tpu_custom_call.1} parent=1 // pred_fallthru
      _
    %57 = sfence
    %v58 = vld [vmem:[%s0] sm:$0xff]
    %v59 = vld [vmem:[%s1] sm:$0xff]
    %vm60 = vcmask 261120
    %v61 = vsel %vm60, %v58, 0.0
    %62 = vadd.xlane.f32.xlu0 %v61
    %v63 = vpop.xlane.xlu0 %62
    %v64 = vrot.slane %v63, 4
    %v65 = vadd.f32 %v63, %v64
    %v66 = vrot.slane %v65, 2
    %v67 = vadd.f32 %v65, %v66
    %v68 = vrot.slane %v67, 1
    %v69 = vadd.f32 %v67, %v68
    %v70 = vmul.f32 %v58, %v58
    %v71 = vsel %vm60, %v70, 0.0
    %72 = vadd.xlane.f32.xlu0 %v71
    %v73 = vpop.xlane.xlu0 %72
    %v74 = vrot.slane %v73, 4
    %v75 = vadd.f32 %v73, %v74
    %v76 = vrot.slane %v75, 2
    %v77 = vadd.f32 %v75, %v76
    %v78 = vrot.slane %v77, 1
    %v79 = vadd.f32 %v77, %v78
    %v80 = vmul.f32 %v69, 0.00390625
    %v81 = vmul.f32 %v79, 0.00390625
    %v82 = vmul.f32 %v80, %v80
    %v83 = vsub.f32 %v81, %v82
    %v84 = vmax.f32 %v83, 0.0
    %v85 = vsel %vm60, %v59, 0.0
    %86 = vadd.xlane.f32.xlu0 %v85
    %v87 = vpop.xlane.xlu0 %86
    %v88 = vrot.slane %v87, 4
    %v89 = vadd.f32 %v87, %v88
    %v90 = vrot.slane %v89, 2
    %v91 = vadd.f32 %v89, %v90
    %v92 = vrot.slane %v91, 1
    %v93 = vadd.f32 %v91, %v92
    %v94 = vmul.f32 %v59, %v59
    %v95 = vsel %vm60, %v94, 0.0
    %96 = vadd.xlane.f32.xlu0 %v95
    %v97 = vpop.xlane.xlu0 %96
    %v98 = vrot.slane %v97, 4
    %v99 = vadd.f32 %v97, %v98
    %v100 = vrot.slane %v99, 2
    %v101 = vadd.f32 %v99, %v100
    %v102 = vrot.slane %v101, 1
    %v103 = vadd.f32 %v101, %v102
    %v104 = vmul.f32 %v93, 0.00390625
    %v105 = vmul.f32 %v103, 0.00390625
    %v106 = vmul.f32 %v104, %v104
    %v107 = vsub.f32 %v105, %v106
    %v108 = vmax.f32 %v107, 0.0
    %s109 = sld [smem:[#allocation2]]
    %v110 = vadd.f32 %v84, 1e-05
    %v111 = vrsqrt.pop %v110
    %v112 = vstv %s109
    %v113 = vmul.f32 %v112, %v111
    %s114 = sld [smem:[#allocation2 + $0x1]]
    %v115 = vadd.f32 %v108, 1e-05
    %v116 = vrsqrt.pop %v115
    %v117 = vstv %s114
    %v118 = vmul.f32 %v117, %v116
    %s119 = sld [smem:[#allocation2 + $0x2]]
    %v120 = vmul.f32 %v80, %v113
    %v121 = vstv %s119
    %v122 = vsub.f32 %v121, %v120
    %s123 = sld [smem:[#allocation2 + $0x3]]
    %v124 = vmul.f32 %v104, %v118
    %v125 = vstv %s123
    %v126 = vsub.f32 %v125, %v124
    %v127 = vmul.f32 %v58, %v113
    %v128 = vld [vmem:[%s2] sm:$0xff]
    %v129 = vld [vmem:[%s2 + $0x8] sm:$0xff]
    %v130 = vld [vmem:[%s2 + $0x10] sm:$0xff]
    %v131 = vld [vmem:[%s2 + $0x18] sm:$0xff]
    %v132 = vld [vmem:[%s2 + $0x20] sm:$0xff]
    %v133 = vld [vmem:[%s2 + $0x28] sm:$0xff]
    %v134 = vld [vmem:[%s2 + $0x30] sm:$0xff]
    %v135 = vld [vmem:[%s2 + $0x38] sm:$0xff]
    %v136 = vmul.f32 %v59, %v118
    %v137 = vld [vmem:[%s3] sm:$0xff]
    %v138 = vld [vmem:[%s3 + $0x8] sm:$0xff]
    %v139 = vld [vmem:[%s3 + $0x10] sm:$0xff]
    %v140 = vld [vmem:[%s3 + $0x18] sm:$0xff]
    %v141 = vld [vmem:[%s3 + $0x20] sm:$0xff]
    %v142 = vld [vmem:[%s3 + $0x28] sm:$0xff]
    %v143 = vld [vmem:[%s3 + $0x30] sm:$0xff]
    %v144 = vld [vmem:[%s3 + $0x38] sm:$0xff]
    %v146 = vsel %vm60, %v136, 0
    %148 = vmatprep.subr.mxu0 %v138
    %149 = vmatpush1.msra.mxu0 %v137
    %150 = vmatprep.subr.mxu0 %v140
    %151 = vmatpush1.msra.mxu0 %v139
    %152 = vmatprep.subr.mxu0 %v142
    %153 = vmatpush1.msra.mxu0 %v141
    %154 = vmatprep.subr.mxu0 %v144
    %155 = vmatpush1.msra.mxu0 %v143
    %156 = vmatprep.subr.mxu0 0.0
    %157 = vmatpush1.msra.mxu0 0.0
    %158 = vmatprep.subr.mxu0 0.0
    %159 = vmatpush1.msra.mxu0 0.0
    %160 = vmatprep.subr.mxu0 0.0
    %161 = vmatpush1.msra.mxu0 0.0
    %162 = vmatprep.subr.mxu0 0.0
    %163 = vmatpush1.msra.mxu0 0.0
    %164 = vmatprep.subr.mxu0 0.0
    %165 = vmatpush1.msra.mxu0 0.0
    %166 = vmatprep.subr.mxu0 0.0
    %167 = vmatpush1.msra.mxu0 0.0
    %168 = vmatprep.subr.mxu0 0.0
    %169 = vmatpush1.msra.mxu0 0.0
    %170 = vmatprep.subr.mxu0 0.0
    %171 = vmatpush1.msra.mxu0 0.0
    %172 = vmatprep.subr.mxu0 0.0
    %173 = vmatpush1.msra.mxu0 0.0
    %174 = vmatprep.subr.mxu0 0.0
    %175 = vmatpush1.msra.mxu0 0.0
    %176 = vmatprep.subr.mxu0 0.0
    %177 = vmatpush1.msra.mxu0 0.0
    %178 = vmatprep.subr.mxu0 0.0
    %179 = vmatpush1.msra.mxu0 0.0
    %180 = vmatprep.subr.mxu0 0.0
    %181 = vmatpush1.msra.mxu0 0.0
    %182 = vmatprep.subr.mxu0 0.0
    %183 = vmatpush1.msra.mxu0 0.0
    %184 = vmatprep.subr.mxu0 0.0
    %185 = vmatpush1.msra.mxu0 0.0
    %186 = vmatprep.subr.mxu0 0.0
    %187 = vmatpush1.msra.mxu0 0.0
    %188 = vmatprep.subr.mxu0 0.0
    %189 = vmatpush1.msra.mxu0 0.0
    %190 = vmatprep.subr.mxu0 0.0
    %191 = vmatpush1.msra.mxu0 0.0
    %192 = vmatprep.subr.mxu0 0.0
    %193 = vmatpush1.msra.mxu0 0.0
    %194 = vmatprep.subr.mxu0 0.0
    %195 = vmatpush1.msra.mxu0 0.0
    %196 = vmatprep.subr.mxu0 0.0
    %197 = vmatpush1.msra.mxu0 0.0
    %198 = vmatprep.subr.mxu0 0.0
    %199 = vmatpush1.msra.mxu0 0.0
    %200 = vmatprep.subr.mxu0 0.0
    %201 = vmatpush1.msra.mxu0 0.0
    %202 = vmatprep.subr.mxu0 0.0
    %203 = vmatpush1.msra.mxu0 0.0
    %204 = vmatprep.subr.mxu0 0.0
    %205 = vmatpush1.msra.mxu0 0.0
    %206 = vmatprep.subr.mxu0 0.0
    %207 = vmatpush1.msra.mxu0 0.0
    %208 = vmatprep.subr.mxu0 0.0
    %209 = vmatpush1.msra.mxu0 0.0
    %210 = vmatprep.subr.mxu0 0.0
    %211 = vmatpush1.msra.mxu0 0.0
    %212 = vmatprep.mubr.f32.mxu0 0.0
    %213 = vmatmul.mubr.f32.gmra.mrb[0].mxu0 %v146
    %v214 = vpop.f32.mrb[0].mxu0
    %v215 = vadd.f32 0.0, %v214
    %v216 = vpop.f32.mrb[0].mxu0
    %v217 = vadd.f32 0.0, %v216
    %218 = vdwg.mxu0
    %v220 = vsel %vm60, %v127, 0
    %222 = vmatprep.subr.mxu0 %v129
    %223 = vmatpush1.msra.mxu0 %v128
    %224 = vmatprep.subr.mxu0 %v131
    %225 = vmatpush1.msra.mxu0 %v130
    %226 = vmatprep.subr.mxu0 %v133
    %227 = vmatpush1.msra.mxu0 %v132
    %228 = vmatprep.subr.mxu0 %v135
    %229 = vmatpush1.msra.mxu0 %v134
    %230 = vmatprep.subr.mxu0 0.0
    %231 = vmatpush1.msra.mxu0 0.0
    %232 = vmatprep.subr.mxu0 0.0
    %233 = vmatpush1.msra.mxu0 0.0
    %234 = vmatprep.subr.mxu0 0.0
    %235 = vmatpush1.msra.mxu0 0.0
    %236 = vmatprep.subr.mxu0 0.0
    %237 = vmatpush1.msra.mxu0 0.0
    %238 = vmatprep.subr.mxu0 0.0
    %239 = vmatpush1.msra.mxu0 0.0
    %240 = vmatprep.subr.mxu0 0.0
    %241 = vmatpush1.msra.mxu0 0.0
    %242 = vmatprep.subr.mxu0 0.0
    %243 = vmatpush1.msra.mxu0 0.0
    %244 = vmatprep.subr.mxu0 0.0
    %245 = vmatpush1.msra.mxu0 0.0
    %246 = vmatprep.subr.mxu0 0.0
    %247 = vmatpush1.msra.mxu0 0.0
    %248 = vmatprep.subr.mxu0 0.0
    %249 = vmatpush1.msra.mxu0 0.0
    %250 = vmatprep.subr.mxu0 0.0
    %251 = vmatpush1.msra.mxu0 0.0
    %252 = vmatprep.subr.mxu0 0.0
    %253 = vmatpush1.msra.mxu0 0.0
    %254 = vmatprep.subr.mxu0 0.0
    %255 = vmatpush1.msra.mxu0 0.0
    %256 = vmatprep.subr.mxu0 0.0
    %257 = vmatpush1.msra.mxu0 0.0
    %258 = vmatprep.subr.mxu0 0.0
    %259 = vmatpush1.msra.mxu0 0.0
    %260 = vmatprep.subr.mxu0 0.0
    %261 = vmatpush1.msra.mxu0 0.0
    %262 = vmatprep.subr.mxu0 0.0
    %263 = vmatpush1.msra.mxu0 0.0
    %264 = vmatprep.subr.mxu0 0.0
    %265 = vmatpush1.msra.mxu0 0.0
    %266 = vmatprep.subr.mxu0 0.0
    %267 = vmatpush1.msra.mxu0 0.0
    %268 = vmatprep.subr.mxu0 0.0
    %269 = vmatpush1.msra.mxu0 0.0
    %270 = vmatprep.subr.mxu0 0.0
    %271 = vmatpush1.msra.mxu0 0.0
    %272 = vmatprep.subr.mxu0 0.0
    %273 = vmatpush1.msra.mxu0 0.0
    %274 = vmatprep.subr.mxu0 0.0
    %275 = vmatpush1.msra.mxu0 0.0
    %276 = vmatprep.subr.mxu0 0.0
    %277 = vmatpush1.msra.mxu0 0.0
    %278 = vmatprep.subr.mxu0 0.0
    %279 = vmatpush1.msra.mxu0 0.0
    %280 = vmatprep.subr.mxu0 0.0
    %281 = vmatpush1.msra.mxu0 0.0
    %282 = vmatprep.subr.mxu0 0.0
    %283 = vmatpush1.msra.mxu0 0.0
    %284 = vmatprep.subr.mxu0 0.0
    %285 = vmatpush1.msra.mxu0 0.0
    %286 = vmatprep.mubr.f32.mxu0 0.0
    %287 = vmatmul.mubr.f32.gmra.mrb[0].mxu0 %v220
    %v288 = vpop.f32.mrb[0].mxu0
    %v289 = vadd.f32 %v215, %v288
    %v290 = vpop.f32.mrb[0].mxu0
    %v291 = vadd.f32 %v217, %v290
    %292 = vdwg.mxu0
    %v293 = vld [vmem:[%s4] ss:$2 sm:$0x3]
    %v294 = vmul.f32 %v122, %v293
    %s295 = scalar_lea.vmem %s4, 1
    %v296 = vld [vmem:[%s295] ss:$2 sm:$0x3]
    %v297 = vmul.f32 %v126, %v296
    %v298 = vadd.f32 %v294, %v297
    %v300 = vlaneseq
    %v301 = vshrl.u32 %v300, 7
    %v302 = vsub.s32 0, %v301
    %v303 = vrot.slane %v298, %v302
    %v304 = vlaneseq
    %v305 = vshrl.u32 %v304, 7
    %v306 = vsub.s32 1, %v305
    %v307 = vrot.slane %v298, %v306
    %v310 = vadd.f32 %v289, %v303
    %v311 = vadd.f32 %v291, %v307
    %v312 = vrot.slane %v310, 4
    %v313 = vadd.f32 %v310, %v312
    %v314 = vrot.slane %v313, 2
    %v315 = vadd.f32 %v313, %v314
    %v316 = vrot.slane %v315, 1
    %v317 = vadd.f32 %v315, %v316
    %v318 = vrot.slane %v311, 4
    %v319 = vadd.f32 %v311, %v318
    %v320 = vrot.slane %v319, 2
    %v321 = vadd.f32 %v319, %v320
    %v322 = vrot.slane %v321, 1
    %v323 = vadd.f32 %v321, %v322
    %v324 = vmul.f32 %v310, %v310
    %v325 = vmul.f32 %v311, %v311
    %v326 = vrot.slane %v324, 4
    %v327 = vadd.f32 %v324, %v326
    %v328 = vrot.slane %v327, 2
    %v329 = vadd.f32 %v327, %v328
    %v330 = vrot.slane %v329, 1
    %v331 = vadd.f32 %v329, %v330
    %v332 = vrot.slane %v325, 4
    %v333 = vadd.f32 %v325, %v332
    %v334 = vrot.slane %v333, 2
    %v335 = vadd.f32 %v333, %v334
    %v336 = vrot.slane %v335, 1
    %v337 = vadd.f32 %v335, %v336
    %v338 = vld [vmem:[%s5] sm:$0xff]
    %v339 = vld [vmem:[%s5 + $0x8] sm:$0xff]
    %v340 = vld [vmem:[%s5 + $0x10] sm:$0xff]
    %v341 = vld [vmem:[%s5 + $0x18] sm:$0xff]
    %v342 = vld [vmem:[%s5 + $0x20] sm:$0xff]
    %v343 = vld [vmem:[%s5 + $0x28] sm:$0xff]
    %v344 = vld [vmem:[%s5 + $0x30] sm:$0xff]
    %v345 = vld [vmem:[%s5 + $0x38] sm:$0xff]
    %v346 = vld [vmem:[%s5 + $0x40] sm:$0xff]
    %v347 = vld [vmem:[%s5 + $0x48] sm:$0xff]
    %v348 = vld [vmem:[%s5 + $0x50] sm:$0xff]
    %v349 = vld [vmem:[%s5 + $0x58] sm:$0xff]
    %v350 = vld [vmem:[%s5 + $0x60] sm:$0xff]
    %v351 = vld [vmem:[%s5 + $0x68] sm:$0xff]
    %v352 = vld [vmem:[%s5 + $0x70] sm:$0xff]
    %v353 = vld [vmem:[%s5 + $0x78] sm:$0xff]
    %v354 = vld [vmem:[%s5 + $0x80] sm:$0xff]
    %v355 = vld [vmem:[%s5 + $0x88] sm:$0xff]
    %v356 = vld [vmem:[%s5 + $0x90] sm:$0xff]
    %v357 = vld [vmem:[%s5 + $0x98] sm:$0xff]
    %v358 = vld [vmem:[%s5 + $0xa0] sm:$0xff]
    %v359 = vld [vmem:[%s5 + $0xa8] sm:$0xff]
    %v360 = vld [vmem:[%s5 + $0xb0] sm:$0xff]
    %v361 = vld [vmem:[%s5 + $0xb8] sm:$0xff]
    %v362 = vld [vmem:[%s5 + $0xc0] sm:$0xff]
    %v363 = vld [vmem:[%s5 + $0xc8] sm:$0xff]
    %v364 = vld [vmem:[%s5 + $0xd0] sm:$0xff]
    %v365 = vld [vmem:[%s5 + $0xd8] sm:$0xff]
    %v366 = vld [vmem:[%s5 + $0xe0] sm:$0xff]
    %v367 = vld [vmem:[%s5 + $0xe8] sm:$0xff]
    %v368 = vld [vmem:[%s5 + $0xf0] sm:$0xff]
    %v369 = vld [vmem:[%s5 + $0xf8] sm:$0xff]
    %370 = vmatprep.subr.mxu0 0.0
    %371 = vmatpush1.msra.mxu0 %v338
    %372 = vmatprep.subr.mxu0 0.0
    %373 = vmatpush1.msra.mxu0 %v339
    %374 = vmatprep.subr.mxu0 0.0
    %375 = vmatpush1.msra.mxu0 %v340
    %376 = vmatprep.subr.mxu0 0.0
    %377 = vmatpush1.msra.mxu0 %v341
    %378 = vmatprep.subr.mxu0 0.0
    %379 = vmatpush1.msra.mxu0 %v342
    %380 = vmatprep.subr.mxu0 0.0
    %381 = vmatpush1.msra.mxu0 %v343
    %382 = vmatprep.subr.mxu0 0.0
    %383 = vmatpush1.msra.mxu0 %v344
    %384 = vmatprep.subr.mxu0 0.0
    %385 = vmatpush1.msra.mxu0 %v345
    %386 = vmatprep.subr.mxu0 0.0
    %387 = vmatpush1.msra.mxu0 %v346
    %388 = vmatprep.subr.mxu0 0.0
    %389 = vmatpush1.msra.mxu0 %v347
    %390 = vmatprep.subr.mxu0 0.0
    %391 = vmatpush1.msra.mxu0 %v348
    %392 = vmatprep.subr.mxu0 0.0
    %393 = vmatpush1.msra.mxu0 %v349
    %394 = vmatprep.subr.mxu0 0.0
    %395 = vmatpush1.msra.mxu0 %v350
    %396 = vmatprep.subr.mxu0 0.0
    %397 = vmatpush1.msra.mxu0 %v351
    %398 = vmatprep.subr.mxu0 0.0
    %399 = vmatpush1.msra.mxu0 %v352
    %400 = vmatprep.subr.mxu0 0.0
    %401 = vmatpush1.msra.mxu0 %v353
    %402 = vmatprep.subr.mxu0 0.0
    %403 = vmatpush1.msra.mxu0 %v354
    %404 = vmatprep.subr.mxu0 0.0
    %405 = vmatpush1.msra.mxu0 %v355
    %406 = vmatprep.subr.mxu0 0.0
    %407 = vmatpush1.msra.mxu0 %v356
    %408 = vmatprep.subr.mxu0 0.0
    %409 = vmatpush1.msra.mxu0 %v357
    %410 = vmatprep.subr.mxu0 0.0
    %411 = vmatpush1.msra.mxu0 %v358
    %412 = vmatprep.subr.mxu0 0.0
    %413 = vmatpush1.msra.mxu0 %v359
    %414 = vmatprep.subr.mxu0 0.0
    %415 = vmatpush1.msra.mxu0 %v360
    %416 = vmatprep.subr.mxu0 0.0
    %417 = vmatpush1.msra.mxu0 %v361
    %418 = vmatprep.subr.mxu0 0.0
    %419 = vmatpush1.msra.mxu0 %v362
    %420 = vmatprep.subr.mxu0 0.0
    %421 = vmatpush1.msra.mxu0 %v363
    %422 = vmatprep.subr.mxu0 0.0
    %423 = vmatpush1.msra.mxu0 %v364
    %424 = vmatprep.subr.mxu0 0.0
    %425 = vmatpush1.msra.mxu0 %v365
    %426 = vmatprep.subr.mxu0 0.0
    %427 = vmatpush1.msra.mxu0 %v366
    %428 = vmatprep.subr.mxu0 0.0
    %429 = vmatpush1.msra.mxu0 %v367
    %430 = vmatprep.subr.mxu0 0.0
    %431 = vmatpush1.msra.mxu0 %v368
    %432 = vmatprep.subr.mxu0 0.0
    %433 = vmatpush1.msra.mxu0 %v369
    %434 = vmatprep.mubr.f32.mxu0 %v323
    %435 = vmatmul.mubr.f32.gmra.mrb[0].mxu0 %v317
    %v436 = vpop.f32.mrb[0].mxu0
    %v437 = vadd.f32 0.0, %v436
    %v438 = vpop.f32.mrb[0].mxu0
    %439 = vdwg.mxu0
    %v440 = vmul.f32 %v437, 0.00390625
    %441 = vmatprep.subr.mxu0 0.0
    %442 = vmatpush1.msra.mxu0 %v338
    %443 = vmatprep.subr.mxu0 0.0
    %444 = vmatpush1.msra.mxu0 %v339
    %445 = vmatprep.subr.mxu0 0.0
    %446 = vmatpush1.msra.mxu0 %v340
    %447 = vmatprep.subr.mxu0 0.0
    %448 = vmatpush1.msra.mxu0 %v341
    %449 = vmatprep.subr.mxu0 0.0
    %450 = vmatpush1.msra.mxu0 %v342
    %451 = vmatprep.subr.mxu0 0.0
    %452 = vmatpush1.msra.mxu0 %v343
    %453 = vmatprep.subr.mxu0 0.0
    %454 = vmatpush1.msra.mxu0 %v344
    %455 = vmatprep.subr.mxu0 0.0
    %456 = vmatpush1.msra.mxu0 %v345
    %457 = vmatprep.subr.mxu0 0.0
    %458 = vmatpush1.msra.mxu0 %v346
    %459 = vmatprep.subr.mxu0 0.0
    %460 = vmatpush1.msra.mxu0 %v347
    %461 = vmatprep.subr.mxu0 0.0
    %462 = vmatpush1.msra.mxu0 %v348
    %463 = vmatprep.subr.mxu0 0.0
    %464 = vmatpush1.msra.mxu0 %v349
    %465 = vmatprep.subr.mxu0 0.0
    %466 = vmatpush1.msra.mxu0 %v350
    %467 = vmatprep.subr.mxu0 0.0
    %468 = vmatpush1.msra.mxu0 %v351
    %469 = vmatprep.subr.mxu0 0.0
    %470 = vmatpush1.msra.mxu0 %v352
    %471 = vmatprep.subr.mxu0 0.0
    %472 = vmatpush1.msra.mxu0 %v353
    %473 = vmatprep.subr.mxu0 0.0
    %474 = vmatpush1.msra.mxu0 %v354
    %475 = vmatprep.subr.mxu0 0.0
    %476 = vmatpush1.msra.mxu0 %v355
    %477 = vmatprep.subr.mxu0 0.0
    %478 = vmatpush1.msra.mxu0 %v356
    %479 = vmatprep.subr.mxu0 0.0
    %480 = vmatpush1.msra.mxu0 %v357
    %481 = vmatprep.subr.mxu0 0.0
    %482 = vmatpush1.msra.mxu0 %v358
    %483 = vmatprep.subr.mxu0 0.0
    %484 = vmatpush1.msra.mxu0 %v359
    %485 = vmatprep.subr.mxu0 0.0
    %486 = vmatpush1.msra.mxu0 %v360
    %487 = vmatprep.subr.mxu0 0.0
    %488 = vmatpush1.msra.mxu0 %v361
    %489 = vmatprep.subr.mxu0 0.0
    %490 = vmatpush1.msra.mxu0 %v362
    %491 = vmatprep.subr.mxu0 0.0
    %492 = vmatpush1.msra.mxu0 %v363
    %493 = vmatprep.subr.mxu0 0.0
    %494 = vmatpush1.msra.mxu0 %v364
    %495 = vmatprep.subr.mxu0 0.0
    %496 = vmatpush1.msra.mxu0 %v365
    %497 = vmatprep.subr.mxu0 0.0
    %498 = vmatpush1.msra.mxu0 %v366
    %499 = vmatprep.subr.mxu0 0.0
    %500 = vmatpush1.msra.mxu0 %v367
    %501 = vmatprep.subr.mxu0 0.0
    %502 = vmatpush1.msra.mxu0 %v368
    %503 = vmatprep.subr.mxu0 0.0
    %504 = vmatpush1.msra.mxu0 %v369
    %505 = vmatprep.mubr.f32.mxu0 %v337
    %506 = vmatmul.mubr.f32.gmra.mrb[0].mxu0 %v331
    %v507 = vpop.f32.mrb[0].mxu0
    %v508 = vadd.f32 0.0, %v507
    %v509 = vpop.f32.mrb[0].mxu0
    %510 = vdwg.mxu0
    %v511 = vmul.f32 %v508, 0.00390625
    %v512 = vmul.f32 %v440, %v440
    %v513 = vsub.f32 %v511, %v512
    %v514 = vmax.f32 %v513, 0.0
    %v515 = vadd.f32 %v514, 1e-05
    %v516 = vrsqrt.pop %v515
    %v517 = vld [vmem:[%s6] sm:$0xff]
    %v518 = vld [vmem:[%s6 + $0x8] sm:$0xff]
    %vm519 = vcmask 64512
    %v521 = vsel %vm519, %v440, 0
    %523 = vmatprep.subr.mxu0 %v518
    %524 = vmatpush1.msra.mxu0 %v517
    %525 = vmatprep.subr.mxu0 0.0
    %526 = vmatpush1.msra.mxu0 0.0
    %527 = vmatprep.subr.mxu0 0.0
    %528 = vmatpush1.msra.mxu0 0.0
    %529 = vmatprep.subr.mxu0 0.0
    %530 = vmatpush1.msra.mxu0 0.0
    %531 = vmatprep.subr.mxu0 0.0
    %532 = vmatpush1.msra.mxu0 0.0
    %533 = vmatprep.subr.mxu0 0.0
    %534 = vmatpush1.msra.mxu0 0.0
    %535 = vmatprep.subr.mxu0 0.0
    %536 = vmatpush1.msra.mxu0 0.0
    %537 = vmatprep.subr.mxu0 0.0
    %538 = vmatpush1.msra.mxu0 0.0
    %539 = vmatprep.subr.mxu0 0.0
    %540 = vmatpush1.msra.mxu0 0.0
    %541 = vmatprep.subr.mxu0 0.0
    %542 = vmatpush1.msra.mxu0 0.0
    %543 = vmatprep.subr.mxu0 0.0
    %544 = vmatpush1.msra.mxu0 0.0
    %545 = vmatprep.subr.mxu0 0.0
    %546 = vmatpush1.msra.mxu0 0.0
    %547 = vmatprep.subr.mxu0 0.0
    %548 = vmatpush1.msra.mxu0 0.0
    %549 = vmatprep.subr.mxu0 0.0
    %550 = vmatpush1.msra.mxu0 0.0
    %551 = vmatprep.subr.mxu0 0.0
    %552 = vmatpush1.msra.mxu0 0.0
    %553 = vmatprep.subr.mxu0 0.0
    %554 = vmatpush1.msra.mxu0 0.0
    %555 = vmatprep.subr.mxu0 0.0
    %556 = vmatpush1.msra.mxu0 0.0
    %557 = vmatprep.subr.mxu0 0.0
    %558 = vmatpush1.msra.mxu0 0.0
    %559 = vmatprep.subr.mxu0 0.0
    %560 = vmatpush1.msra.mxu0 0.0
    %561 = vmatprep.subr.mxu0 0.0
    %562 = vmatpush1.msra.mxu0 0.0
    %563 = vmatprep.subr.mxu0 0.0
    %564 = vmatpush1.msra.mxu0 0.0
    %565 = vmatprep.subr.mxu0 0.0
    %566 = vmatpush1.msra.mxu0 0.0
    %567 = vmatprep.subr.mxu0 0.0
    %568 = vmatpush1.msra.mxu0 0.0
    %569 = vmatprep.subr.mxu0 0.0
    %570 = vmatpush1.msra.mxu0 0.0
    %571 = vmatprep.subr.mxu0 0.0
    %572 = vmatpush1.msra.mxu0 0.0
    %573 = vmatprep.subr.mxu0 0.0
    %574 = vmatpush1.msra.mxu0 0.0
    %575 = vmatprep.subr.mxu0 0.0
    %576 = vmatpush1.msra.mxu0 0.0
    %577 = vmatprep.subr.mxu0 0.0
    %578 = vmatpush1.msra.mxu0 0.0
    %579 = vmatprep.subr.mxu0 0.0
    %580 = vmatpush1.msra.mxu0 0.0
    %581 = vmatprep.subr.mxu0 0.0
    %582 = vmatpush1.msra.mxu0 0.0
    %583 = vmatprep.subr.mxu0 0.0
    %584 = vmatpush1.msra.mxu0 0.0
    %585 = vmatprep.subr.mxu0 0.0
    %586 = vmatpush1.msra.mxu0 0.0
    %587 = vmatprep.mubr.f32.mxu0 0.0
    %588 = vmatmul.mubr.f32.gmra.mrb[0].mxu0 %v521
    %v589 = vpop.f32.mrb[0].mxu0
    %v590 = vadd.f32 0.0, %v589
    %v591 = vpop.f32.mrb[0].mxu0
    %v592 = vadd.f32 0.0, %v591
    %593 = vdwg.mxu0
    %v595 = vsel %vm519, %v516, 0
    %597 = vmatprep.subr.mxu0 %v518
    %598 = vmatpush1.msra.mxu0 %v517
    %599 = vmatprep.subr.mxu0 0.0
    %600 = vmatpush1.msra.mxu0 0.0
    %601 = vmatprep.subr.mxu0 0.0
    %602 = vmatpush1.msra.mxu0 0.0
    %603 = vmatprep.subr.mxu0 0.0
    %604 = vmatpush1.msra.mxu0 0.0
    %605 = vmatprep.subr.mxu0 0.0
    %606 = vmatpush1.msra.mxu0 0.0
    %607 = vmatprep.subr.mxu0 0.0
    %608 = vmatpush1.msra.mxu0 0.0
    %609 = vmatprep.subr.mxu0 0.0
    %610 = vmatpush1.msra.mxu0 0.0
    %611 = vmatprep.subr.mxu0 0.0
    %612 = vmatpush1.msra.mxu0 0.0
    %613 = vmatprep.subr.mxu0 0.0
    %614 = vmatpush1.msra.mxu0 0.0
    %615 = vmatprep.subr.mxu0 0.0
    %616 = vmatpush1.msra.mxu0 0.0
    %617 = vmatprep.subr.mxu0 0.0
    %618 = vmatpush1.msra.mxu0 0.0
    %619 = vmatprep.subr.mxu0 0.0
    %620 = vmatpush1.msra.mxu0 0.0
    %621 = vmatprep.subr.mxu0 0.0
    %622 = vmatpush1.msra.mxu0 0.0
    %623 = vmatprep.subr.mxu0 0.0
    %624 = vmatpush1.msra.mxu0 0.0
    %625 = vmatprep.subr.mxu0 0.0
    %626 = vmatpush1.msra.mxu0 0.0
    %627 = vmatprep.subr.mxu0 0.0
    %628 = vmatpush1.msra.mxu0 0.0
    %629 = vmatprep.subr.mxu0 0.0
    %630 = vmatpush1.msra.mxu0 0.0
    %631 = vmatprep.subr.mxu0 0.0
    %632 = vmatpush1.msra.mxu0 0.0
    %633 = vmatprep.subr.mxu0 0.0
    %634 = vmatpush1.msra.mxu0 0.0
    %635 = vmatprep.subr.mxu0 0.0
    %636 = vmatpush1.msra.mxu0 0.0
    %637 = vmatprep.subr.mxu0 0.0
    %638 = vmatpush1.msra.mxu0 0.0
    %639 = vmatprep.subr.mxu0 0.0
    %640 = vmatpush1.msra.mxu0 0.0
    %641 = vmatprep.subr.mxu0 0.0
    %642 = vmatpush1.msra.mxu0 0.0
    %643 = vmatprep.subr.mxu0 0.0
    %644 = vmatpush1.msra.mxu0 0.0
    %645 = vmatprep.subr.mxu0 0.0
    %646 = vmatpush1.msra.mxu0 0.0
    %647 = vmatprep.subr.mxu0 0.0
    %648 = vmatpush1.msra.mxu0 0.0
    %649 = vmatprep.subr.mxu0 0.0
    %650 = vmatpush1.msra.mxu0 0.0
    %651 = vmatprep.subr.mxu0 0.0
    %652 = vmatpush1.msra.mxu0 0.0
    %653 = vmatprep.subr.mxu0 0.0
    %654 = vmatpush1.msra.mxu0 0.0
    %655 = vmatprep.subr.mxu0 0.0
    %656 = vmatpush1.msra.mxu0 0.0
    %657 = vmatprep.subr.mxu0 0.0
    %658 = vmatpush1.msra.mxu0 0.0
    %659 = vmatprep.subr.mxu0 0.0
    %660 = vmatpush1.msra.mxu0 0.0
    %661 = vmatprep.mubr.f32.mxu0 0.0
    %662 = vmatmul.mubr.f32.gmra.mrb[0].mxu0 %v595
    %v663 = vpop.f32.mrb[0].mxu0
    %v664 = vadd.f32 0.0, %v663
    %v665 = vpop.f32.mrb[0].mxu0
    %v666 = vadd.f32 0.0, %v665
    %667 = vdwg.mxu0
    %v668 = vld [vmem:[%s7] sm:$0x3]
    %v671 = vcombine.low %v664, %v666
    %v673 = vunpack.c.l.s4 1966171168
    %v674 = vunpack.c.0.s8 %v673
    %v675 = vlaneseq
    %v676 = vshrl.u32 %v675, 7
    %v677 = vsub.s32 %v674, %v676
    %v678 = vrot.slane %v671, %v677
    %v680 = vunpack.c.l.s4 1966171168
    %v681 = vunpack.c.0.s8 %v680
    %v682 = vlaneseq
    %v683 = vshrl.u32 %v682, 7
    %v684 = vsub.s32 %v681, %v683
    %v685 = vrot.slane %v678, %v684
    %v687 = vmul.f32 %v668, %v685
    %v688 = vld [vmem:[%s8] sm:$0x3]
    %v690 = vlaneseq
    %v691 = vshrl.u32 %v690, 7
    %v692 = vsub.s32 0, %v691
    %v693 = vrot.slane %v687, %v692
    %v694 = vlaneseq
    %v695 = vshrl.u32 %v694, 7
    %v696 = vsub.s32 1, %v695
    %v697 = vrot.slane %v687, %v696
    %v700 = vmul.f32 %v590, %v693
    %v701 = vmul.f32 %v592, %v697
    %v704 = vcombine.low %v700, %v701
    %v706 = vunpack.c.l.s4 1966171168
    %v707 = vunpack.c.0.s8 %v706
    %v708 = vlaneseq
    %v709 = vshrl.u32 %v708, 7
    %v710 = vsub.s32 %v707, %v709
    %v711 = vrot.slane %v704, %v710
    %v713 = vunpack.c.l.s4 1966171168
    %v714 = vunpack.c.0.s8 %v713
    %v715 = vlaneseq
    %v716 = vshrl.u32 %v715, 7
    %v717 = vsub.s32 %v714, %v716
    %v718 = vrot.slane %v711, %v717
    %v720 = vsub.f32 %v688, %v718
    %v721 = vmul.f32 %v310, %v693
    %v722 = vmul.f32 %v311, %v697
    %v724 = vlaneseq
    %v725 = vshrl.u32 %v724, 7
    %v726 = vsub.s32 0, %v725
    %v727 = vrot.slane %v720, %v726
    %v728 = vlaneseq
    %v729 = vshrl.u32 %v728, 7
    %v730 = vsub.s32 1, %v729
    %v731 = vrot.slane %v720, %v730
    %v734 = vadd.f32 %v721, %v727
    %v735 = vadd.f32 %v722, %v731
    %v736 = vmax.f32 %v734, 0.0
    %v737 = vmax.f32 %v735, 0.0
    %v738 = vld [vmem:[%s9] sm:$0xff]
    %v739 = vld [vmem:[%s9 + $0x8] sm:$0xff]
    %v740 = vld [vmem:[%s9 + $0x10] sm:$0xff]
    %v741 = vld [vmem:[%s9 + $0x18] sm:$0xff]
    %v742 = vld [vmem:[%s9 + $0x20] sm:$0xff]
    %v743 = vld [vmem:[%s9 + $0x28] sm:$0xff]
    %v744 = vld [vmem:[%s9 + $0x30] sm:$0xff]
    %v745 = vld [vmem:[%s9 + $0x38] sm:$0xff]
    %v746 = vld [vmem:[%s9 + $0x40] sm:$0xff]
    %v747 = vld [vmem:[%s9 + $0x48] sm:$0xff]
    %v748 = vld [vmem:[%s9 + $0x50] sm:$0xff]
    %v749 = vld [vmem:[%s9 + $0x58] sm:$0xff]
    %v750 = vld [vmem:[%s9 + $0x60] sm:$0xff]
    %v751 = vld [vmem:[%s9 + $0x68] sm:$0xff]
    %v752 = vld [vmem:[%s9 + $0x70] sm:$0xff]
    %v753 = vld [vmem:[%s9 + $0x78] sm:$0xff]
    %v754 = vld [vmem:[%s9 + $0x80] sm:$0xff]
    %v755 = vld [vmem:[%s9 + $0x88] sm:$0xff]
    %v756 = vld [vmem:[%s9 + $0x90] sm:$0xff]
    %v757 = vld [vmem:[%s9 + $0x98] sm:$0xff]
    %v758 = vld [vmem:[%s9 + $0xa0] sm:$0xff]
    %v759 = vld [vmem:[%s9 + $0xa8] sm:$0xff]
    %v760 = vld [vmem:[%s9 + $0xb0] sm:$0xff]
    %v761 = vld [vmem:[%s9 + $0xb8] sm:$0xff]
    %v762 = vld [vmem:[%s9 + $0xc0] sm:$0xff]
    %v763 = vld [vmem:[%s9 + $0xc8] sm:$0xff]
    %v764 = vld [vmem:[%s9 + $0xd0] sm:$0xff]
    %v765 = vld [vmem:[%s9 + $0xd8] sm:$0xff]
    %v766 = vld [vmem:[%s9 + $0xe0] sm:$0xff]
    %v767 = vld [vmem:[%s9 + $0xe8] sm:$0xff]
    %v768 = vld [vmem:[%s9 + $0xf0] sm:$0xff]
    %v769 = vld [vmem:[%s9 + $0xf8] sm:$0xff]
    %770 = vmatprep.subr.mxu0 0.0
    %771 = vmatpush1.msra.mxu0 %v738
    %772 = vmatprep.subr.mxu0 0.0
    %773 = vmatpush1.msra.mxu0 %v739
    %774 = vmatprep.subr.mxu0 0.0
    %775 = vmatpush1.msra.mxu0 %v740
    %776 = vmatprep.subr.mxu0 0.0
    %777 = vmatpush1.msra.mxu0 %v741
    %778 = vmatprep.subr.mxu0 0.0
    %779 = vmatpush1.msra.mxu0 %v742
    %780 = vmatprep.subr.mxu0 0.0
    %781 = vmatpush1.msra.mxu0 %v743
    %782 = vmatprep.subr.mxu0 0.0
    %783 = vmatpush1.msra.mxu0 %v744
    %784 = vmatprep.subr.mxu0 0.0
    %785 = vmatpush1.msra.mxu0 %v745
    %786 = vmatprep.subr.mxu0 0.0
    %787 = vmatpush1.msra.mxu0 %v746
    %788 = vmatprep.subr.mxu0 0.0
    %789 = vmatpush1.msra.mxu0 %v747
    %790 = vmatprep.subr.mxu0 0.0
    %791 = vmatpush1.msra.mxu0 %v748
    %792 = vmatprep.subr.mxu0 0.0
    %793 = vmatpush1.msra.mxu0 %v749
    %794 = vmatprep.subr.mxu0 0.0
    %795 = vmatpush1.msra.mxu0 %v750
    %796 = vmatprep.subr.mxu0 0.0
    %797 = vmatpush1.msra.mxu0 %v751
    %798 = vmatprep.subr.mxu0 0.0
    %799 = vmatpush1.msra.mxu0 %v752
    %800 = vmatprep.subr.mxu0 0.0
    %801 = vmatpush1.msra.mxu0 %v753
    %802 = vmatprep.subr.mxu0 0.0
    %803 = vmatpush1.msra.mxu0 %v754
    %804 = vmatprep.subr.mxu0 0.0
    %805 = vmatpush1.msra.mxu0 %v755
    %806 = vmatprep.subr.mxu0 0.0
    %807 = vmatpush1.msra.mxu0 %v756
    %808 = vmatprep.subr.mxu0 0.0
    %809 = vmatpush1.msra.mxu0 %v757
    %810 = vmatprep.subr.mxu0 0.0
    %811 = vmatpush1.msra.mxu0 %v758
    %812 = vmatprep.subr.mxu0 0.0
    %813 = vmatpush1.msra.mxu0 %v759
    %814 = vmatprep.subr.mxu0 0.0
    %815 = vmatpush1.msra.mxu0 %v760
    %816 = vmatprep.subr.mxu0 0.0
    %817 = vmatpush1.msra.mxu0 %v761
    %818 = vmatprep.subr.mxu0 0.0
    %819 = vmatpush1.msra.mxu0 %v762
    %820 = vmatprep.subr.mxu0 0.0
    %821 = vmatpush1.msra.mxu0 %v763
    %822 = vmatprep.subr.mxu0 0.0
    %823 = vmatpush1.msra.mxu0 %v764
    %824 = vmatprep.subr.mxu0 0.0
    %825 = vmatpush1.msra.mxu0 %v765
    %826 = vmatprep.subr.mxu0 0.0
    %827 = vmatpush1.msra.mxu0 %v766
    %828 = vmatprep.subr.mxu0 0.0
    %829 = vmatpush1.msra.mxu0 %v767
    %830 = vmatprep.subr.mxu0 0.0
    %831 = vmatpush1.msra.mxu0 %v768
    %832 = vmatprep.subr.mxu0 0.0
    %833 = vmatpush1.msra.mxu0 %v769
    %834 = vmatprep.mubr.f32.mxu0 %v737
    %835 = vmatmul.mubr.f32.gmra.mrb[0].mxu0 %v736
    %v836 = vpop.f32.mrb[0].mxu0
    %v837 = vadd.f32 0.0, %v836
    %v838 = vpop.f32.mrb[0].mxu0
    %839 = vdwg.mxu0
    %v840 = vsel %vm60, %v837, 0.0
    %v841 = vrot.slane %v840, 4
    %v842 = vadd.f32 %v840, %v841
    %v843 = vrot.slane %v842, 2
    %v844 = vadd.f32 %v842, %v843
    %v845 = vrot.slane %v844, 1
    %v846 = vadd.f32 %v844, %v845
    %v847 = vmul.f32 %v846, 0.125
    %v848 = vmul.f32 %v837, %v837
    %v849 = vsel %vm60, %v848, 0.0
    %v850 = vrot.slane %v849, 4
    %v851 = vadd.f32 %v849, %v850
    %v852 = vrot.slane %v851, 2
    %v853 = vadd.f32 %v851, %v852
    %v854 = vrot.slane %v853, 1
    %v855 = vadd.f32 %v853, %v854
    %v856 = vmul.f32 %v855, 0.125
    %v857 = vmul.f32 %v847, %v847
    %v858 = vsub.f32 %v856, %v857
    %v859 = vmax.f32 %v858, 0.0
    %v860 = vld [vmem:[%s10] sm:$0x1]
    %v861 = vadd.f32 %v859, 1e-05
    %v862 = vrsqrt.pop %v861
    %v863 = vmul.f32 %v860, %v862
    %v864 = vld [vmem:[%s11] sm:$0x1]
    %v865 = vmul.f32 %v847, %v863
    %v866 = vsub.f32 %v864, %v865
    %v868 = vlaneseq
    %v869 = vshrl.u32 %v868, 7
    %v870 = vsub.s32 0, %v869
    %v871 = vrot.slane %v863, %v870
    %v873 = vmul.f32 %v837, %v871
    %v875 = vlaneseq
    %v876 = vshrl.u32 %v875, 7
    %v877 = vsub.s32 0, %v876
    %v878 = vrot.slane %v866, %v877
    %v880 = vadd.f32 %v873, %v878
    %v881 = vmax.f32 %v880, 0.0
    %882 = vst.msk [vmem:[#allocation5] sm:$0xff] %vm60, %v881
    // Predicated region
    $region58: #{tpu_custom_call.1} parent=1 // pred_check
      _
    $region59: #{tpu_custom_call.1} parent=1 // pred_check_branch
      %884 = sbr.rel (0) target = $region61
    $region60: #{tpu_custom_call.1} parent=1 // pred_region
      %s886 = ssub.s32 128, 128
      %887 = vsyncadd [#allocation3], %s886
      %s889 = sshll.u32 [#allocation5], 4
      %s890 = int_to_ptr.vmem [resolvable:$true] %s889
      %892 = dma.vmem_to_hbm [thread:$0]  %s890, 128, %s13, [#allocation3]
    $region61: #{tpu_custom_call.1} parent=1 // pred_fallthru
      _
    // Predicated region
    $region62: #{tpu_custom_call.1} parent=1 // pred_check
      _
    $region63: #{tpu_custom_call.1} parent=1 // pred_check_branch
      %894 = sbr.rel (0) target = $region65
    $region64: #{tpu_custom_call.1} parent=1 // pred_region
      %895 = dma.done [#allocation3], 128
    $region65: #{tpu_custom_call.1} parent=1 // pred_fallthru
      _
    %896 = vsyncpa [#allocation3], 1
    %897 = vsyncpa [#allocation4], 1

</llo_original>
